<compile_context>
chip_gen: v7x
topology: tpu7x:2x2x1
jax: 0.10.0
libtpu: 0.0.40
codegen_flags: <defaults>
</compile_context>

<pallas_src>
import jax
import jax.numpy as jnp
from jax.experimental import pallas as pl
from jax.experimental.pallas import tpu as pltpu

LN_EPS = 1e-5  # PyTorch nn.LayerNorm default


def _round_up(n, m):
    return ((n + m - 1) // m) * m


def _layernorm(x, gamma, beta):
    # x: (rows, D) f32, gamma/beta: (1, D) f32
    mu = jnp.mean(x, axis=-1, keepdims=True)
    xc = x - mu
    var = jnp.mean(xc * xc, axis=-1, keepdims=True)
    return xc * jax.lax.rsqrt(var + LN_EPS) * gamma + beta


def _gelu_exact(x):
    # nn.GELU default = exact erf-based GELU (computed in f32 here)
    return 0.5 * x * (1.0 + jax.lax.erf(x * 0.7071067811865476))


def _const_spec(shape):
    """BlockSpec for a grid-invariant operand; single-buffered to save VMEM."""
    index_map = lambda i: (0,) * len(shape)
    try:
        return pl.BlockSpec(shape, index_map, pipeline_mode=pl.Buffered(1))
    except Exception:  # fall back gracefully if pipeline_mode is unavailable
        return pl.BlockSpec(shape, index_map)


def feature_adaptor_kernel(
    x_ref,        # (tm, A*chunk)      input rows (row-tiled, double-buffered)
    fuse_w_ref,   # (A, chunk, E)      fuse weights with LN1 gamma folded in
    fuse_b_ref,   # (A, 1, E)   f32    fuse biases with LN1 beta folded in
    w1_ref,       # (A, E, M)
    b1_ref,       # (A, 1, M)   f32
    w2_ref,       # (A, M, E)
    b2_ref,       # (A, 1, E)   f32
    ln2_w_ref,    # (1, E)
    ln2_b_ref,    # (1, E)
    out_ref,      # (tm, E)
):
    A, chunk, E = fuse_w_ref.shape
    cdtype = fuse_w_ref.dtype  # matmul operand dtype (bf16-ready)

    # LN1 statistics in f32; affine already folded into fuse_w / fuse_b.
    xf = x_ref[...].astype(jnp.float32)
    mu = jnp.mean(xf, axis=-1, keepdims=True)
    var = jnp.mean(jnp.square(xf - mu), axis=-1, keepdims=True)
    rstd = jax.lax.rsqrt(var + LN_EPS)

    acc = jnp.zeros((xf.shape[0], E), jnp.float32)
    for i in range(A):  # static, small loop over adaptors
        # Normalize only this chunk (no full-width normalized temporary).
        xi = ((xf[:, i * chunk:(i + 1) * chunk] - mu) * rstd).astype(cdtype)
        # fuse_fcs[i]  (LN1 affine pre-folded)
        h = jnp.dot(xi, fuse_w_ref[i],
                    preferred_element_type=jnp.float32) + fuse_b_ref[i]
        # adap_mlps[i]: fc1 -> GELU -> fc2, residual add
        m = jnp.dot(h.astype(cdtype), w1_ref[i],
                    preferred_element_type=jnp.float32) + b1_ref[i]
        m = _gelu_exact(m)
        m = jnp.dot(m.astype(cdtype), w2_ref[i],
                    preferred_element_type=jnp.float32) + b2_ref[i]
        acc = acc + m + h  # Mlp(h) + h, accumulated over adaptors (f32)

    out = _layernorm(acc,
                     ln2_w_ref[...].astype(jnp.float32),
                     ln2_b_ref[...].astype(jnp.float32))
    out_ref[...] = out.astype(out_ref.dtype)


def feature_adaptor(x, params, *, tm=128, vmem_cap_bytes=96 * 1024 * 1024):
    """x: (B, N, embed_dim*depth) -> (B, N, embed_dim)."""
    B, N, full_dim = x.shape
    A, chunk, E = params["fuse_w"].shape
    M = params["w1"].shape[2]
    assert full_dim == A * chunk

    # ---- Fold LN1 affine (gamma, beta) into the fuse weights / biases -------
    gamma = params["ln1_w"].reshape(A, chunk, 1).astype(jnp.float32)
    beta = params["ln1_b"].reshape(A, chunk).astype(jnp.float32)
    fuse_w_f32 = params["fuse_w"].astype(jnp.float32)
    fuse_w = (gamma * fuse_w_f32).astype(params["fuse_w"].dtype)
    fuse_b = (params["fuse_b"].astype(jnp.float32)
              + jnp.einsum("ac,ace->ae", beta, fuse_w_f32)).reshape(A, 1, E)
    b1 = params["b1"].astype(jnp.float32).reshape(A, 1, M)
    b2 = params["b2"].astype(jnp.float32).reshape(A, 1, E)

    # ---- Row tiling: pad T up to a multiple of tm (no divisibility assert) --
    T = B * N
    tm = max(8, min(tm, _round_up(T, 8)))
    T_pad = _round_up(T, tm)
    x2 = x.reshape(T, full_dim)
    if T_pad != T:
        x2 = jnp.pad(x2, ((0, T_pad - T), (0, 0)))
    grid = (T_pad // tm,)

    # ---- VMEM budget estimate -> explicit vmem limit -------------------------
    itemsize = x2.dtype.itemsize
    weight_bytes = sum(
        int(a.size) * a.dtype.itemsize
        for a in (fuse_w, fuse_b, params["w1"], b1, params["w2"], b2,
                  params["ln2_w"], params["ln2_b"]))
    est = (2 * tm * full_dim * itemsize        # double-buffered x tile
           + 2 * tm * E * itemsize             # double-buffered out tile
           + weight_bytes                      # single-buffered weights
           + 4 * tm * full_dim * 4             # f32 temporaries headroom
           + 4 * tm * max(E, M) * 4)
    vmem_limit = int(min(max(est, 32 * 1024 * 1024), vmem_cap_bytes))

    out2 = pl.pallas_call(
        feature_adaptor_kernel,
        out_shape=jax.ShapeDtypeStruct((T_pad, E), x.dtype),
        grid_spec=pltpu.PrefetchScalarGridSpec(
            num_scalar_prefetch=0,
            grid=grid,
            in_specs=[
                pl.BlockSpec((tm, full_dim), lambda i: (i, 0)),  # x rows
                _const_spec((A, chunk, E)),                       # fuse weights
                _const_spec((A, 1, E)),                           # fuse biases
                _const_spec((A, E, M)),                           # mlp fc1 w
                _const_spec((A, 1, M)),                           # mlp fc1 b
                _const_spec((A, M, E)),                           # mlp fc2 w
                _const_spec((A, 1, E)),                           # mlp fc2 b
                _const_spec((1, E)),                              # ln2 weight
                _const_spec((1, E)),                              # ln2 bias
            ],
            out_specs=pl.BlockSpec((tm, E), lambda i: (i, 0)),
        ),
        compiler_params=pltpu.CompilerParams(
            dimension_semantics=("parallel",),
            vmem_limit_bytes=vmem_limit),
    )(
        x2,
        fuse_w, fuse_b,
        params["w1"], b1,
        params["w2"], b2,
        params["ln2_w"], params["ln2_b"],
    )
    return out2[:T].reshape(B, N, E)


def init_params(key, embed_dim, depth, num_adap, mid_embed_dim):
    """Deterministic init matching the module's _init_weights:
    Linear: xavier_uniform weight, zero bias; LayerNorm: weight=1, bias=0."""
    full_dim = embed_dim * depth
    chunk = embed_dim * (depth // num_adap)

    def xavier(k, fan_in, fan_out, shape):
        bound = jnp.sqrt(6.0 / (fan_in + fan_out))
        return jax.random.uniform(k, shape, jnp.float32, -bound, bound)

    k_fuse, k_w1, k_w2 = jax.random.split(key, 3)
    return {
        "ln1_w": jnp.ones((1, full_dim), jnp.float32),
        "ln1_b": jnp.zeros((1, full_dim), jnp.float32),
        # stored as (in, out) so the kernel does x @ W (== PyTorch x @ W.T)
        "fuse_w": xavier(k_fuse, chunk, embed_dim, (num_adap, chunk, embed_dim)),
        "fuse_b": jnp.zeros((num_adap, embed_dim), jnp.float32),
        "w1": xavier(k_w1, embed_dim, mid_embed_dim,
                     (num_adap, embed_dim, mid_embed_dim)),
        "b1": jnp.zeros((num_adap, mid_embed_dim), jnp.float32),
        "w2": xavier(k_w2, mid_embed_dim, embed_dim,
                     (num_adap, mid_embed_dim, embed_dim)),
        "b2": jnp.zeros((num_adap, embed_dim), jnp.float32),
        "ln2_w": jnp.ones((1, embed_dim), jnp.float32),
        "ln2_b": jnp.zeros((1, embed_dim), jnp.float32),
    }


def feature_adaptor_ref(x, params):
    """Pure-JAX reference of the PyTorch forward, for validation."""
    def ln(v, g, b):
        mu = jnp.mean(v, axis=-1, keepdims=True)
        var = jnp.mean((v - mu) ** 2, axis=-1, keepdims=True)
        return (v - mu) * jax.lax.rsqrt(var + LN_EPS) * g[0] + b[0]

    x = ln(x, params["ln1_w"], params["ln1_b"])
    A, chunk, E = params["fuse_w"].shape
    xset = jnp.split(x, A, axis=-1)
    out = 0.0
    for i in range(A):
        h = xset[i] @ params["fuse_w"][i] + params["fuse_b"][i]
        m = h @ params["w1"][i] + params["b1"][i]
        m = jax.nn.gelu(m, approximate=False)
        m = m @ params["w2"][i] + params["b2"][i]
        out = out + (m + h)
    return ln(out, params["ln2_w"], params["ln2_b"])


if __name__ == "__main__":
    # Small shapes consistent with the module.
    embed_dim, depth, num_adap, mid_embed_dim = 32, 4, 2, 64
    B, N = 2, 8

    key = jax.random.PRNGKey(0)
    k_x, k_p, k_l1, k_l2, k_l3, k_l4 = jax.random.split(key, 6)
    x = jax.random.normal(k_x, (B, N, embed_dim * depth), jnp.float32)
    params = init_params(k_p, embed_dim, depth, num_adap, mid_embed_dim)

    # Non-trivial LayerNorm affines so the gamma/beta folding path is exercised.
    full_dim = embed_dim * depth
    params["ln1_w"] = 1.0 + 0.1 * jax.random.normal(k_l1, (1, full_dim), jnp.float32)
    params["ln1_b"] = 0.05 * jax.random.normal(k_l2, (1, full_dim), jnp.float32)
    params["ln2_w"] = 1.0 + 0.1 * jax.random.normal(k_l3, (1, embed_dim), jnp.float32)
    params["ln2_b"] = 0.05 * jax.random.normal(k_l4, (1, embed_dim), jnp.float32)

    out = feature_adaptor(x, params)
    out = jax.block_until_ready(out)

    ref = feature_adaptor_ref(x, params)
    assert out.shape == (B, N, embed_dim)
    assert jnp.allclose(out, ref, rtol=1e-4, atol=1e-4), "mismatch vs reference"

    print("KERNEL_OK")
</pallas_src>

<mosaic_0001>
module attributes {stable_mosaic.version = 11 : i64} {
  func.func @feature_adaptor_kernel(%arg0: i32, %arg1: memref<16x128xf32, #tpu.memory_space<vmem>>, %arg2: memref<2x64x32xf32, #tpu.memory_space<vmem>>, %arg3: memref<2x1x32xf32, #tpu.memory_space<vmem>>, %arg4: memref<2x32x64xf32, #tpu.memory_space<vmem>>, %arg5: memref<2x1x64xf32, #tpu.memory_space<vmem>>, %arg6: memref<2x64x32xf32, #tpu.memory_space<vmem>>, %arg7: memref<2x1x32xf32, #tpu.memory_space<vmem>>, %arg8: memref<1x32xf32, #tpu.memory_space<vmem>>, %arg9: memref<1x32xf32, #tpu.memory_space<vmem>>, %arg10: memref<16x32xf32, #tpu.memory_space<vmem>>) attributes {dimension_semantics = [#tpu.dimension_semantics<parallel>], iteration_bounds = array<i64: 1>, scalar_prefetch = 0 : i64, scratch_operands = 0 : i64, tpu.core_type = #tpu.core_type<tc>, window_params = [{transform_indices = @transform_0, window_bounds = array<i64: 16, 128>}, {pipeline_mode = #tpu.pipeline_mode<synchronous>, transform_indices = @transform_1, window_bounds = array<i64: 2, 64, 32>}, {pipeline_mode = #tpu.pipeline_mode<synchronous>, transform_indices = @transform_2, window_bounds = array<i64: 2, 1, 32>}, {pipeline_mode = #tpu.pipeline_mode<synchronous>, transform_indices = @transform_3, window_bounds = array<i64: 2, 32, 64>}, {pipeline_mode = #tpu.pipeline_mode<synchronous>, transform_indices = @transform_4, window_bounds = array<i64: 2, 1, 64>}, {pipeline_mode = #tpu.pipeline_mode<synchronous>, transform_indices = @transform_5, window_bounds = array<i64: 2, 64, 32>}, {pipeline_mode = #tpu.pipeline_mode<synchronous>, transform_indices = @transform_6, window_bounds = array<i64: 2, 1, 32>}, {pipeline_mode = #tpu.pipeline_mode<synchronous>, transform_indices = @transform_7, window_bounds = array<i64: 1, 32>}, {pipeline_mode = #tpu.pipeline_mode<synchronous>, transform_indices = @transform_8, window_bounds = array<i64: 1, 32>}, {transform_indices = @transform_9, window_bounds = array<i64: 16, 32>}]} {
    %c0 = arith.constant 0 : index
    %c0_0 = arith.constant 0 : index
    %0 = vector.load %arg1[%c0, %c0_0] : memref<16x128xf32, #tpu.memory_space<vmem>>, vector<16x128xf32>
    %cst = arith.constant dense<0.000000e+00> : vector<16xf32>
    %1 = vector.multi_reduction <add>, %0, %cst [1] : vector<16x128xf32> to vector<16xf32>
    %2 = vector.shape_cast %1 : vector<16xf32> to vector<16x1xf32>
    %cst_1 = arith.constant 1.280000e+02 : f32
    %3 = vector.broadcast %cst_1 : f32 to vector<16x1xf32>
    %4 = arith.divf %2, %3 : vector<16x1xf32>
    %5 = vector.broadcast %4 : vector<16x1xf32> to vector<16x128xf32>
    %6 = arith.subf %0, %5 : vector<16x128xf32>
    %7 = arith.mulf %6, %6 : vector<16x128xf32>
    %cst_2 = arith.constant dense<0.000000e+00> : vector<16xf32>
    %8 = vector.multi_reduction <add>, %7, %cst_2 [1] : vector<16x128xf32> to vector<16xf32>
    %9 = vector.shape_cast %8 : vector<16xf32> to vector<16x1xf32>
    %cst_3 = arith.constant 1.280000e+02 : f32
    %10 = vector.broadcast %cst_3 : f32 to vector<16x1xf32>
    %11 = arith.divf %9, %10 : vector<16x1xf32>
    %cst_4 = arith.constant 9.99999974E-6 : f32
    %12 = vector.broadcast %cst_4 : f32 to vector<16x1xf32>
    %13 = arith.addf %11, %12 : vector<16x1xf32>
    %14 = math.rsqrt %13 : vector<16x1xf32>
    %cst_5 = arith.constant 0.000000e+00 : f32
    %15 = vector.broadcast %cst_5 : f32 to vector<16x32xf32>
    %16 = vector.extract_strided_slice %0 {offsets = [0, 0], sizes = [16, 64], strides = [1, 1]} : vector<16x128xf32> to vector<16x64xf32>
    %17 = vector.broadcast %4 : vector<16x1xf32> to vector<16x64xf32>
    %18 = arith.subf %16, %17 : vector<16x64xf32>
    %19 = vector.broadcast %14 : vector<16x1xf32> to vector<16x64xf32>
    %20 = arith.mulf %18, %19 : vector<16x64xf32>
    %c0_6 = arith.constant 0 : index
    %c0_7 = arith.constant 0 : index
    %c0_8 = arith.constant 0 : index
    %21 = vector.load %arg2[%c0_6, %c0_7, %c0_8] : memref<2x64x32xf32, #tpu.memory_space<vmem>>, vector<1x64x32xf32>
    %22 = vector.shape_cast %21 : vector<1x64x32xf32> to vector<64x32xf32>
    %cst_9 = arith.constant dense<0.000000e+00> : vector<16x32xf32>
    %23 = tpu.matmul %20, %22, %cst_9 {dimension_numbers = #tpu.dot_dimension_numbers<[1], [0], [0], [1], [0, 0, 1, 1], [], []>} : vector<16x64xf32>, vector<64x32xf32>, vector<16x32xf32> -> vector<16x32xf32>
    %c0_10 = arith.constant 0 : index
    %c0_11 = arith.constant 0 : index
    %c0_12 = arith.constant 0 : index
    %24 = vector.load %arg3[%c0_10, %c0_11, %c0_12] : memref<2x1x32xf32, #tpu.memory_space<vmem>>, vector<1x1x32xf32>
    %25 = vector.shape_cast %24 : vector<1x1x32xf32> to vector<1x32xf32>
    %26 = vector.broadcast %25 : vector<1x32xf32> to vector<16x32xf32>
    %27 = arith.addf %23, %26 : vector<16x32xf32>
    %c0_13 = arith.constant 0 : index
    %c0_14 = arith.constant 0 : index
    %c0_15 = arith.constant 0 : index
    %28 = vector.load %arg4[%c0_13, %c0_14, %c0_15] : memref<2x32x64xf32, #tpu.memory_space<vmem>>, vector<1x32x64xf32>
    %29 = vector.shape_cast %28 : vector<1x32x64xf32> to vector<32x64xf32>
    %cst_16 = arith.constant dense<0.000000e+00> : vector<16x64xf32>
    %30 = tpu.matmul %27, %29, %cst_16 {dimension_numbers = #tpu.dot_dimension_numbers<[1], [0], [0], [1], [0, 0, 1, 1], [], []>} : vector<16x32xf32>, vector<32x64xf32>, vector<16x64xf32> -> vector<16x64xf32>
    %c0_17 = arith.constant 0 : index
    %c0_18 = arith.constant 0 : index
    %c0_19 = arith.constant 0 : index
    %31 = vector.load %arg5[%c0_17, %c0_18, %c0_19] : memref<2x1x64xf32, #tpu.memory_space<vmem>>, vector<1x1x64xf32>
    %32 = vector.shape_cast %31 : vector<1x1x64xf32> to vector<1x64xf32>
    %33 = vector.broadcast %32 : vector<1x64xf32> to vector<16x64xf32>
    %34 = arith.addf %30, %33 : vector<16x64xf32>
    %cst_20 = arith.constant 5.000000e-01 : f32
    %35 = vector.broadcast %cst_20 : f32 to vector<16x64xf32>
    %36 = arith.mulf %35, %34 : vector<16x64xf32>
    %cst_21 = arith.constant 0.707106769 : f32
    %37 = vector.broadcast %cst_21 : f32 to vector<16x64xf32>
    %38 = arith.mulf %34, %37 : vector<16x64xf32>
    %39 = math.erf %38 : vector<16x64xf32>
    %cst_22 = arith.constant 1.000000e+00 : f32
    %40 = vector.broadcast %cst_22 : f32 to vector<16x64xf32>
    %41 = arith.addf %40, %39 : vector<16x64xf32>
    %42 = arith.mulf %36, %41 : vector<16x64xf32>
    %c0_23 = arith.constant 0 : index
    %c0_24 = arith.constant 0 : index
    %c0_25 = arith.constant 0 : index
    %43 = vector.load %arg6[%c0_23, %c0_24, %c0_25] : memref<2x64x32xf32, #tpu.memory_space<vmem>>, vector<1x64x32xf32>
    %44 = vector.shape_cast %43 : vector<1x64x32xf32> to vector<64x32xf32>
    %cst_26 = arith.constant dense<0.000000e+00> : vector<16x32xf32>
    %45 = tpu.matmul %42, %44, %cst_26 {dimension_numbers = #tpu.dot_dimension_numbers<[1], [0], [0], [1], [0, 0, 1, 1], [], []>} : vector<16x64xf32>, vector<64x32xf32>, vector<16x32xf32> -> vector<16x32xf32>
    %c0_27 = arith.constant 0 : index
    %c0_28 = arith.constant 0 : index
    %c0_29 = arith.constant 0 : index
    %46 = vector.load %arg7[%c0_27, %c0_28, %c0_29] : memref<2x1x32xf32, #tpu.memory_space<vmem>>, vector<1x1x32xf32>
    %47 = vector.shape_cast %46 : vector<1x1x32xf32> to vector<1x32xf32>
    %48 = vector.broadcast %47 : vector<1x32xf32> to vector<16x32xf32>
    %49 = arith.addf %45, %48 : vector<16x32xf32>
    %50 = arith.addf %15, %49 : vector<16x32xf32>
    %51 = arith.addf %50, %27 : vector<16x32xf32>
    %52 = vector.extract_strided_slice %0 {offsets = [0, 64], sizes = [16, 64], strides = [1, 1]} : vector<16x128xf32> to vector<16x64xf32>
    %53 = vector.broadcast %4 : vector<16x1xf32> to vector<16x64xf32>
    %54 = arith.subf %52, %53 : vector<16x64xf32>
    %55 = vector.broadcast %14 : vector<16x1xf32> to vector<16x64xf32>
    %56 = arith.mulf %54, %55 : vector<16x64xf32>
    %c1 = arith.constant 1 : index
    %c0_30 = arith.constant 0 : index
    %c0_31 = arith.constant 0 : index
    %57 = vector.load %arg2[%c1, %c0_30, %c0_31] : memref<2x64x32xf32, #tpu.memory_space<vmem>>, vector<1x64x32xf32>
    %58 = vector.shape_cast %57 : vector<1x64x32xf32> to vector<64x32xf32>
    %cst_32 = arith.constant dense<0.000000e+00> : vector<16x32xf32>
    %59 = tpu.matmul %56, %58, %cst_32 {dimension_numbers = #tpu.dot_dimension_numbers<[1], [0], [0], [1], [0, 0, 1, 1], [], []>} : vector<16x64xf32>, vector<64x32xf32>, vector<16x32xf32> -> vector<16x32xf32>
    %c1_33 = arith.constant 1 : index
    %c0_34 = arith.constant 0 : index
    %c0_35 = arith.constant 0 : index
    %60 = vector.load %arg3[%c1_33, %c0_34, %c0_35] : memref<2x1x32xf32, #tpu.memory_space<vmem>>, vector<1x1x32xf32>
    %61 = vector.shape_cast %60 : vector<1x1x32xf32> to vector<1x32xf32>
    %62 = vector.broadcast %61 : vector<1x32xf32> to vector<16x32xf32>
    %63 = arith.addf %59, %62 : vector<16x32xf32>
    %c1_36 = arith.constant 1 : index
    %c0_37 = arith.constant 0 : index
    %c0_38 = arith.constant 0 : index
    %64 = vector.load %arg4[%c1_36, %c0_37, %c0_38] : memref<2x32x64xf32, #tpu.memory_space<vmem>>, vector<1x32x64xf32>
    %65 = vector.shape_cast %64 : vector<1x32x64xf32> to vector<32x64xf32>
    %cst_39 = arith.constant dense<0.000000e+00> : vector<16x64xf32>
    %66 = tpu.matmul %63, %65, %cst_39 {dimension_numbers = #tpu.dot_dimension_numbers<[1], [0], [0], [1], [0, 0, 1, 1], [], []>} : vector<16x32xf32>, vector<32x64xf32>, vector<16x64xf32> -> vector<16x64xf32>
    %c1_40 = arith.constant 1 : index
    %c0_41 = arith.constant 0 : index
    %c0_42 = arith.constant 0 : index
    %67 = vector.load %arg5[%c1_40, %c0_41, %c0_42] : memref<2x1x64xf32, #tpu.memory_space<vmem>>, vector<1x1x64xf32>
    %68 = vector.shape_cast %67 : vector<1x1x64xf32> to vector<1x64xf32>
    %69 = vector.broadcast %68 : vector<1x64xf32> to vector<16x64xf32>
    %70 = arith.addf %66, %69 : vector<16x64xf32>
    %cst_43 = arith.constant 5.000000e-01 : f32
    %71 = vector.broadcast %cst_43 : f32 to vector<16x64xf32>
    %72 = arith.mulf %71, %70 : vector<16x64xf32>
    %cst_44 = arith.constant 0.707106769 : f32
    %73 = vector.broadcast %cst_44 : f32 to vector<16x64xf32>
    %74 = arith.mulf %70, %73 : vector<16x64xf32>
    %75 = math.erf %74 : vector<16x64xf32>
    %cst_45 = arith.constant 1.000000e+00 : f32
    %76 = vector.broadcast %cst_45 : f32 to vector<16x64xf32>
    %77 = arith.addf %76, %75 : vector<16x64xf32>
    %78 = arith.mulf %72, %77 : vector<16x64xf32>
    %c1_46 = arith.constant 1 : index
    %c0_47 = arith.constant 0 : index
    %c0_48 = arith.constant 0 : index
    %79 = vector.load %arg6[%c1_46, %c0_47, %c0_48] : memref<2x64x32xf32, #tpu.memory_space<vmem>>, vector<1x64x32xf32>
    %80 = vector.shape_cast %79 : vector<1x64x32xf32> to vector<64x32xf32>
    %cst_49 = arith.constant dense<0.000000e+00> : vector<16x32xf32>
    %81 = tpu.matmul %78, %80, %cst_49 {dimension_numbers = #tpu.dot_dimension_numbers<[1], [0], [0], [1], [0, 0, 1, 1], [], []>} : vector<16x64xf32>, vector<64x32xf32>, vector<16x32xf32> -> vector<16x32xf32>
    %c1_50 = arith.constant 1 : index
    %c0_51 = arith.constant 0 : index
    %c0_52 = arith.constant 0 : index
    %82 = vector.load %arg7[%c1_50, %c0_51, %c0_52] : memref<2x1x32xf32, #tpu.memory_space<vmem>>, vector<1x1x32xf32>
    %83 = vector.shape_cast %82 : vector<1x1x32xf32> to vector<1x32xf32>
    %84 = vector.broadcast %83 : vector<1x32xf32> to vector<16x32xf32>
    %85 = arith.addf %81, %84 : vector<16x32xf32>
    %86 = arith.addf %51, %85 : vector<16x32xf32>
    %87 = arith.addf %86, %63 : vector<16x32xf32>
    %c0_53 = arith.constant 0 : index
    %c0_54 = arith.constant 0 : index
    %88 = vector.load %arg8[%c0_53, %c0_54] : memref<1x32xf32, #tpu.memory_space<vmem>>, vector<1x32xf32>
    %c0_55 = arith.constant 0 : index
    %c0_56 = arith.constant 0 : index
    %89 = vector.load %arg9[%c0_55, %c0_56] : memref<1x32xf32, #tpu.memory_space<vmem>>, vector<1x32xf32>
    %cst_57 = arith.constant dense<0.000000e+00> : vector<16xf32>
    %90 = vector.multi_reduction <add>, %87, %cst_57 [1] : vector<16x32xf32> to vector<16xf32>
    %91 = vector.shape_cast %90 : vector<16xf32> to vector<16x1xf32>
    %cst_58 = arith.constant 3.200000e+01 : f32
    %92 = vector.broadcast %cst_58 : f32 to vector<16x1xf32>
    %93 = arith.divf %91, %92 : vector<16x1xf32>
    %94 = vector.broadcast %93 : vector<16x1xf32> to vector<16x32xf32>
    %95 = arith.subf %87, %94 : vector<16x32xf32>
    %96 = arith.mulf %95, %95 : vector<16x32xf32>
    %cst_59 = arith.constant dense<0.000000e+00> : vector<16xf32>
    %97 = vector.multi_reduction <add>, %96, %cst_59 [1] : vector<16x32xf32> to vector<16xf32>
    %98 = vector.shape_cast %97 : vector<16xf32> to vector<16x1xf32>
    %cst_60 = arith.constant 3.200000e+01 : f32
    %99 = vector.broadcast %cst_60 : f32 to vector<16x1xf32>
    %100 = arith.divf %98, %99 : vector<16x1xf32>
    %cst_61 = arith.constant 9.99999974E-6 : f32
    %101 = vector.broadcast %cst_61 : f32 to vector<16x1xf32>
    %102 = arith.addf %100, %101 : vector<16x1xf32>
    %103 = math.rsqrt %102 : vector<16x1xf32>
    %104 = vector.broadcast %103 : vector<16x1xf32> to vector<16x32xf32>
    %105 = arith.mulf %95, %104 : vector<16x32xf32>
    %106 = vector.broadcast %88 : vector<1x32xf32> to vector<16x32xf32>
    %107 = arith.mulf %105, %106 : vector<16x32xf32>
    %108 = vector.broadcast %89 : vector<1x32xf32> to vector<16x32xf32>
    %109 = arith.addf %107, %108 : vector<16x32xf32>
    %c0_62 = arith.constant 0 : index
    %c0_63 = arith.constant 0 : index
    %110 = vector.load %arg10[%c0_62, %c0_63] : memref<16x32xf32, #tpu.memory_space<vmem>>, vector<16x32xf32>
    tpu.vector_store %arg10[%c0_62, %c0_63], %109 {strides = array<i32>} : memref<16x32xf32, #tpu.memory_space<vmem>>, vector<16x32xf32>,
    return
  }
  func.func @transform_0(%arg0: i32) -> (i32, i32) {
    %c0_i32 = arith.constant 0 : i32
    %c0_i32_0 = arith.constant 0 : i32
    return %arg0, %c0_i32 : i32, i32
  }
  func.func @transform_1(%arg0: i32) -> (i32, i32, i32) {
    %c0_i32 = arith.constant 0 : i32
    %c0_i32_0 = arith.constant 0 : i32
    %c0_i32_1 = arith.constant 0 : i32
    %c0_i32_2 = arith.constant 0 : i32
    return %c0_i32, %c0_i32_0, %c0_i32_1 : i32, i32, i32
  }
  func.func @transform_2(%arg0: i32) -> (i32, i32, i32) {
    %c0_i32 = arith.constant 0 : i32
    %c0_i32_0 = arith.constant 0 : i32
    %c0_i32_1 = arith.constant 0 : i32
    %c0_i32_2 = arith.constant 0 : i32
    return %c0_i32, %c0_i32_0, %c0_i32_1 : i32, i32, i32
  }
  func.func @transform_3(%arg0: i32) -> (i32, i32, i32) {
    %c0_i32 = arith.constant 0 : i32
    %c0_i32_0 = arith.constant 0 : i32
    %c0_i32_1 = arith.constant 0 : i32
    %c0_i32_2 = arith.constant 0 : i32
    return %c0_i32, %c0_i32_0, %c0_i32_1 : i32, i32, i32
  }
  func.func @transform_4(%arg0: i32) -> (i32, i32, i32) {
    %c0_i32 = arith.constant 0 : i32
    %c0_i32_0 = arith.constant 0 : i32
    %c0_i32_1 = arith.constant 0 : i32
    %c0_i32_2 = arith.constant 0 : i32
    return %c0_i32, %c0_i32_0, %c0_i32_1 : i32, i32, i32
  }
  func.func @transform_5(%arg0: i32) -> (i32, i32, i32) {
    %c0_i32 = arith.constant 0 : i32
    %c0_i32_0 = arith.constant 0 : i32
    %c0_i32_1 = arith.constant 0 : i32
    %c0_i32_2 = arith.constant 0 : i32
    return %c0_i32, %c0_i32_0, %c0_i32_1 : i32, i32, i32
  }
  func.func @transform_6(%arg0: i32) -> (i32, i32, i32) {
    %c0_i32 = arith.constant 0 : i32
    %c0_i32_0 = arith.constant 0 : i32
    %c0_i32_1 = arith.constant 0 : i32
    %c0_i32_2 = arith.constant 0 : i32
    return %c0_i32, %c0_i32_0, %c0_i32_1 : i32, i32, i32
  }
  func.func @transform_7(%arg0: i32) -> (i32, i32) {
    %c0_i32 = arith.constant 0 : i32
    %c0_i32_0 = arith.constant 0 : i32
    %c0_i32_1 = arith.constant 0 : i32
    return %c0_i32, %c0_i32_0 : i32, i32
  }
  func.func @transform_8(%arg0: i32) -> (i32, i32) {
    %c0_i32 = arith.constant 0 : i32
    %c0_i32_0 = arith.constant 0 : i32
    %c0_i32_1 = arith.constant 0 : i32
    return %c0_i32, %c0_i32_0 : i32, i32
  }
  func.func @transform_9(%arg0: i32) -> (i32, i32) {
    %c0_i32 = arith.constant 0 : i32
    %c0_i32_0 = arith.constant 0 : i32
    return %arg0, %c0_i32 : i32, i32
  }
}

</mosaic_0001>

<llo_original>
// kernel: tpu_custom_call.1
$region0: #{tpu_custom_call.1}
  #allocation0 [shape = 'u32[]', space=smem, size = 0x4, offset = 0x4, fixed_abs, tag = 'smem constant byte address 0x4 - core index']
  #allocation1 [shape = 'u32[144,128]{1,0:T(1,128)}', space=vmem, size = 0x12000, scoped, tag = 'internal scratch']
  %s0 = inlined_call_operand.vmem [shape: f32[16,128], index: 0, kind: input, shape index: {}]
  %s1 = inlined_call_operand.vmem [shape: f32[2,64,32], index: 1, kind: input, shape index: {}]
  %s2 = inlined_call_operand.vmem [shape: f32[2,1,32], index: 2, kind: input, shape index: {}]
  %s3 = inlined_call_operand.vmem [shape: f32[2,32,64], index: 3, kind: input, shape index: {}]
  %s4 = inlined_call_operand.vmem [shape: f32[2,1,64], index: 4, kind: input, shape index: {}]
  %s5 = inlined_call_operand.vmem [shape: f32[2,64,32], index: 5, kind: input, shape index: {}]
  %s6 = inlined_call_operand.vmem [shape: f32[2,1,32], index: 6, kind: input, shape index: {}]
  %s7 = inlined_call_operand.vmem [shape: f32[1,32], index: 7, kind: input, shape index: {}]
  %s8 = inlined_call_operand.vmem [shape: f32[1,32], index: 8, kind: input, shape index: {}]
  %s9 = inlined_call_operand.hbm [shape: f32[16,32], index: 9, kind: output, shape index: {}]
  %s10 = sld [smem:[#allocation0]]
  $region46: #{tpu_custom_call.1} parent=0
    _
  %s12 = ssub.s32 1, %s10
  %s13 = scalar_select 0, %s12, %s10
  $region1: #{tpu_custom_call.1} parent=0
    #allocation2 [shape = 'u8[8192]{0}', space=vmem, size = 0x2000, scoped, tag = 'output window, operand 0, single buffered']
    #allocation3 [shape = 's32[1]{0}', space=sflag, size = 0x4, scoped, tag = 'scoped memory for tpu_custom_call.1']
    %14 = vsyncpa [#allocation3], 0
    // Predicated region
    $region2: #{tpu_custom_call.1} parent=1 // pred_check
      _
    $region3: #{tpu_custom_call.1} parent=1 // pred_check_branch
      %16 = sbr.rel (0) target = $region5
    $region4: #{tpu_custom_call.1} parent=1 // pred_region
      _
    $region5: #{tpu_custom_call.1} parent=1 // pred_fallthru
      _
    // Predicated region
    $region6: #{tpu_custom_call.1} parent=1 // pred_check
      _
    $region7: #{tpu_custom_call.1} parent=1 // pred_check_branch
      %18 = sbr.rel (0) target = $region9
    $region8: #{tpu_custom_call.1} parent=1 // pred_region
      _
    $region9: #{tpu_custom_call.1} parent=1 // pred_fallthru
      _
    // Predicated region
    $region10: #{tpu_custom_call.1} parent=1 // pred_check
      _
    $region11: #{tpu_custom_call.1} parent=1 // pred_check_branch
      %20 = sbr.rel (0) target = $region13
    $region12: #{tpu_custom_call.1} parent=1 // pred_region
      _
    $region13: #{tpu_custom_call.1} parent=1 // pred_fallthru
      _
    // Predicated region
    $region14: #{tpu_custom_call.1} parent=1 // pred_check
      _
    $region15: #{tpu_custom_call.1} parent=1 // pred_check_branch
      %22 = sbr.rel (0) target = $region17
    $region16: #{tpu_custom_call.1} parent=1 // pred_region
      _
    $region17: #{tpu_custom_call.1} parent=1 // pred_fallthru
      _
    // Predicated region
    $region18: #{tpu_custom_call.1} parent=1 // pred_check
      _
    $region19: #{tpu_custom_call.1} parent=1 // pred_check_branch
      %24 = sbr.rel (0) target = $region21
    $region20: #{tpu_custom_call.1} parent=1 // pred_region
      _
    $region21: #{tpu_custom_call.1} parent=1 // pred_fallthru
      _
    // Predicated region
    $region22: #{tpu_custom_call.1} parent=1 // pred_check
      _
    $region23: #{tpu_custom_call.1} parent=1 // pred_check_branch
      %26 = sbr.rel (0) target = $region25
    $region24: #{tpu_custom_call.1} parent=1 // pred_region
      _
    $region25: #{tpu_custom_call.1} parent=1 // pred_fallthru
      _
    // Predicated region
    $region26: #{tpu_custom_call.1} parent=1 // pred_check
      _
    $region27: #{tpu_custom_call.1} parent=1 // pred_check_branch
      %28 = sbr.rel (0) target = $region29
    $region28: #{tpu_custom_call.1} parent=1 // pred_region
      _
    $region29: #{tpu_custom_call.1} parent=1 // pred_fallthru
      _
    // Predicated region
    $region30: #{tpu_custom_call.1} parent=1 // pred_check
      _
    $region31: #{tpu_custom_call.1} parent=1 // pred_check_branch
      %30 = sbr.rel (0) target = $region33
    $region32: #{tpu_custom_call.1} parent=1 // pred_region
      _
    $region33: #{tpu_custom_call.1} parent=1 // pred_fallthru
      _
    // Predicated region
    $region34: #{tpu_custom_call.1} parent=1 // pred_check
      _
    $region35: #{tpu_custom_call.1} parent=1 // pred_check_branch
      %32 = sbr.rel (0) target = $region37
    $region36: #{tpu_custom_call.1} parent=1 // pred_region
      _
    $region37: #{tpu_custom_call.1} parent=1 // pred_fallthru
      _
    %v33 = vld [vmem:[%s0] sm:$0xff]
    %v34 = vld [vmem:[%s0 + $0x8] sm:$0xff]
    %35 = vadd.xlane.f32.xlu0 %v33
    %v36 = vpop.xlane.xlu0 %35
    %37 = vadd.xlane.f32.xlu0 %v34
    %v38 = vpop.xlane.xlu0 %37
    %v39 = vrcp.pop 128.0
    %v40 = vmul.f32 %v36, %v39
    %v41 = vmul.f32 %v38, %v39
    %v42 = vsub.f32 %v33, %v40
    %v43 = vsub.f32 %v34, %v41
    %v44 = vmul.f32 %v42, %v42
    %v45 = vmul.f32 %v43, %v43
    %46 = vadd.xlane.f32.xlu0 %v44
    %v47 = vpop.xlane.xlu0 %46
    %48 = vadd.xlane.f32.xlu0 %v45
    %v49 = vpop.xlane.xlu0 %48
    %v50 = vmul.f32 %v47, %v39
    %v51 = vmul.f32 %v49, %v39
    %v52 = vadd.f32 %v50, 1e-05
    %v53 = vadd.f32 %v51, 1e-05
    %v54 = vrsqrt.pop %v52
    %v55 = vrsqrt.pop %v53
    %v56 = vmul.f32 %v42, %v54
    %v57 = vmul.f32 %v43, %v55
    %v58 = vld [vmem:[%s1] sm:$0xff]
    %v59 = vld [vmem:[%s1 + $0x8] sm:$0xff]
    %v60 = vld [vmem:[%s1 + $0x10] sm:$0xff]
    %v61 = vld [vmem:[%s1 + $0x18] sm:$0xff]
    %v62 = vld [vmem:[%s1 + $0x20] sm:$0xff]
    %v63 = vld [vmem:[%s1 + $0x28] sm:$0xff]
    %v64 = vld [vmem:[%s1 + $0x30] sm:$0xff]
    %v65 = vld [vmem:[%s1 + $0x38] sm:$0xff]
    %v66 = vld [vmem:[%s2] sm:$0x1]
    %v68 = vlaneseq
    %v69 = vshrl.u32 %v68, 7
    %v70 = vsub.s32 0, %v69
    %v71 = vrot.slane %v66, %v70
    %vm73 = vcmask 523264
    %v75 = vsel %vm73, %v56, 0
    %v78 = vsel %vm73, %v57, 0
    %80 = vmatprep.subr.mxu0 0.0
    %81 = vmatpush1.msra.mxu0 %v58
    %82 = vmatprep.subr.mxu0 0.0
    %83 = vmatpush1.msra.mxu0 %v59
    %84 = vmatprep.subr.mxu0 0.0
    %85 = vmatpush1.msra.mxu0 %v60
    %86 = vmatprep.subr.mxu0 0.0
    %87 = vmatpush1.msra.mxu0 %v61
    %88 = vmatprep.subr.mxu0 0.0
    %89 = vmatpush1.msra.mxu0 %v62
    %90 = vmatprep.subr.mxu0 0.0
    %91 = vmatpush1.msra.mxu0 %v63
    %92 = vmatprep.subr.mxu0 0.0
    %93 = vmatpush1.msra.mxu0 %v64
    %94 = vmatprep.subr.mxu0 0.0
    %95 = vmatpush1.msra.mxu0 %v65
    %96 = vmatprep.subr.mxu0 0.0
    %97 = vmatpush1.msra.mxu0 0.0
    %98 = vmatprep.subr.mxu0 0.0
    %99 = vmatpush1.msra.mxu0 0.0
    %100 = vmatprep.subr.mxu0 0.0
    %101 = vmatpush1.msra.mxu0 0.0
    %102 = vmatprep.subr.mxu0 0.0
    %103 = vmatpush1.msra.mxu0 0.0
    %104 = vmatprep.subr.mxu0 0.0
    %105 = vmatpush1.msra.mxu0 0.0
    %106 = vmatprep.subr.mxu0 0.0
    %107 = vmatpush1.msra.mxu0 0.0
    %108 = vmatprep.subr.mxu0 0.0
    %109 = vmatpush1.msra.mxu0 0.0
    %110 = vmatprep.subr.mxu0 0.0
    %111 = vmatpush1.msra.mxu0 0.0
    %112 = vmatprep.subr.mxu0 0.0
    %113 = vmatpush1.msra.mxu0 0.0
    %114 = vmatprep.subr.mxu0 0.0
    %115 = vmatpush1.msra.mxu0 0.0
    %116 = vmatprep.subr.mxu0 0.0
    %117 = vmatpush1.msra.mxu0 0.0
    %118 = vmatprep.subr.mxu0 0.0
    %119 = vmatpush1.msra.mxu0 0.0
    %120 = vmatprep.subr.mxu0 0.0
    %121 = vmatpush1.msra.mxu0 0.0
    %122 = vmatprep.subr.mxu0 0.0
    %123 = vmatpush1.msra.mxu0 0.0
    %124 = vmatprep.subr.mxu0 0.0
    %125 = vmatpush1.msra.mxu0 0.0
    %126 = vmatprep.subr.mxu0 0.0
    %127 = vmatpush1.msra.mxu0 0.0
    %128 = vmatprep.subr.mxu0 0.0
    %129 = vmatpush1.msra.mxu0 0.0
    %130 = vmatprep.subr.mxu0 0.0
    %131 = vmatpush1.msra.mxu0 0.0
    %132 = vmatprep.subr.mxu0 0.0
    %133 = vmatpush1.msra.mxu0 0.0
    %134 = vmatprep.subr.mxu0 0.0
    %135 = vmatpush1.msra.mxu0 0.0
    %136 = vmatprep.subr.mxu0 0.0
    %137 = vmatpush1.msra.mxu0 0.0
    %138 = vmatprep.subr.mxu0 0.0
    %139 = vmatpush1.msra.mxu0 0.0
    %140 = vmatprep.subr.mxu0 0.0
    %141 = vmatpush1.msra.mxu0 0.0
    %142 = vmatprep.subr.mxu0 0.0
    %143 = vmatpush1.msra.mxu0 0.0
    %144 = vmatprep.mubr.f32.mxu0 0.0
    %145 = vmatmul.mubr.f32.gmra.mrb[0].mxu0 %v75
    %v146 = vpop.f32.mrb[0].mxu0
    %v147 = vadd.f32 %v71, %v146
    %v148 = vpop.f32.mrb[0].mxu0
    %149 = vmatprep.mubr.f32.mxu0 0.0
    %150 = vmatmul.mubr.f32.gmra.mrb[0].mxu0 %v78
    %v151 = vpop.f32.mrb[0].mxu0
    %v152 = vadd.f32 %v71, %v151
    %v153 = vpop.f32.mrb[0].mxu0
    %154 = vdwg.mxu0
    %v155 = vld [vmem:[%s3] sm:$0xff]
    %v156 = vld [vmem:[%s3 + $0x8] sm:$0xff]
    %v157 = vld [vmem:[%s3 + $0x10] sm:$0xff]
    %v158 = vld [vmem:[%s3 + $0x18] sm:$0xff]
    %v159 = vld [vmem:[%s4] sm:$0x1]
    %v161 = vlaneseq
    %v162 = vshrl.u32 %v161, 7
    %v163 = vsub.s32 0, %v162
    %v164 = vrot.slane %v159, %v163
    %vm166 = vcmask 261120
    %v168 = vsel %vm166, %v147, 0
    %v171 = vsel %vm166, %v152, 0
    %173 = vmatprep.subr.mxu0 0.0
    %174 = vmatpush1.msra.mxu0 %v155
    %175 = vmatprep.subr.mxu0 0.0
    %176 = vmatpush1.msra.mxu0 %v156
    %177 = vmatprep.subr.mxu0 0.0
    %178 = vmatpush1.msra.mxu0 %v157
    %179 = vmatprep.subr.mxu0 0.0
    %180 = vmatpush1.msra.mxu0 %v158
    %181 = vmatprep.subr.mxu0 0.0
    %182 = vmatpush1.msra.mxu0 0.0
    %183 = vmatprep.subr.mxu0 0.0
    %184 = vmatpush1.msra.mxu0 0.0
    %185 = vmatprep.subr.mxu0 0.0
    %186 = vmatpush1.msra.mxu0 0.0
    %187 = vmatprep.subr.mxu0 0.0
    %188 = vmatpush1.msra.mxu0 0.0
    %189 = vmatprep.subr.mxu0 0.0
    %190 = vmatpush1.msra.mxu0 0.0
    %191 = vmatprep.subr.mxu0 0.0
    %192 = vmatpush1.msra.mxu0 0.0
    %193 = vmatprep.subr.mxu0 0.0
    %194 = vmatpush1.msra.mxu0 0.0
    %195 = vmatprep.subr.mxu0 0.0
    %196 = vmatpush1.msra.mxu0 0.0
    %197 = vmatprep.subr.mxu0 0.0
    %198 = vmatpush1.msra.mxu0 0.0
    %199 = vmatprep.subr.mxu0 0.0
    %200 = vmatpush1.msra.mxu0 0.0
    %201 = vmatprep.subr.mxu0 0.0
    %202 = vmatpush1.msra.mxu0 0.0
    %203 = vmatprep.subr.mxu0 0.0
    %204 = vmatpush1.msra.mxu0 0.0
    %205 = vmatprep.subr.mxu0 0.0
    %206 = vmatpush1.msra.mxu0 0.0
    %207 = vmatprep.subr.mxu0 0.0
    %208 = vmatpush1.msra.mxu0 0.0
    %209 = vmatprep.subr.mxu0 0.0
    %210 = vmatpush1.msra.mxu0 0.0
    %211 = vmatprep.subr.mxu0 0.0
    %212 = vmatpush1.msra.mxu0 0.0
    %213 = vmatprep.subr.mxu0 0.0
    %214 = vmatpush1.msra.mxu0 0.0
    %215 = vmatprep.subr.mxu0 0.0
    %216 = vmatpush1.msra.mxu0 0.0
    %217 = vmatprep.subr.mxu0 0.0
    %218 = vmatpush1.msra.mxu0 0.0
    %219 = vmatprep.subr.mxu0 0.0
    %220 = vmatpush1.msra.mxu0 0.0
    %221 = vmatprep.subr.mxu0 0.0
    %222 = vmatpush1.msra.mxu0 0.0
    %223 = vmatprep.subr.mxu0 0.0
    %224 = vmatpush1.msra.mxu0 0.0
    %225 = vmatprep.subr.mxu0 0.0
    %226 = vmatpush1.msra.mxu0 0.0
    %227 = vmatprep.subr.mxu0 0.0
    %228 = vmatpush1.msra.mxu0 0.0
    %229 = vmatprep.subr.mxu0 0.0
    %230 = vmatpush1.msra.mxu0 0.0
    %231 = vmatprep.subr.mxu0 0.0
    %232 = vmatpush1.msra.mxu0 0.0
    %233 = vmatprep.subr.mxu0 0.0
    %234 = vmatpush1.msra.mxu0 0.0
    %235 = vmatprep.subr.mxu0 0.0
    %236 = vmatpush1.msra.mxu0 0.0
    %237 = vmatprep.mubr.f32.mxu0 0.0
    %238 = vmatmul.mubr.f32.gmra.mrb[0].mxu0 %v168
    %v239 = vpop.f32.mrb[0].mxu0
    %v240 = vadd.f32 %v164, %v239
    %v241 = vpop.f32.mrb[0].mxu0
    %242 = vmatprep.mubr.f32.mxu0 0.0
    %243 = vmatmul.mubr.f32.gmra.mrb[0].mxu0 %v171
    %v244 = vpop.f32.mrb[0].mxu0
    %v245 = vadd.f32 %v164, %v244
    %v246 = vpop.f32.mrb[0].mxu0
    %247 = vdwg.mxu0
    %v248 = vmul.f32 %v240, 0.5
    %v249 = vmul.f32 %v245, 0.5
    %v250 = vmul.f32 %v240, 0.70710677
    %v251 = vmul.f32 %v245, 0.70710677
    %v252 = verf.f32.pop %v250
    %v253 = verf.f32.pop %v251
    %v254 = vadd.f32 %v252, 1.0
    %v255 = vadd.f32 %v253, 1.0
    %v256 = vmul.f32 %v248, %v254
    %v257 = vmul.f32 %v249, %v255
    %v258 = vld [vmem:[%s5] sm:$0xff]
    %v259 = vld [vmem:[%s5 + $0x8] sm:$0xff]
    %v260 = vld [vmem:[%s5 + $0x10] sm:$0xff]
    %v261 = vld [vmem:[%s5 + $0x18] sm:$0xff]
    %v262 = vld [vmem:[%s5 + $0x20] sm:$0xff]
    %v263 = vld [vmem:[%s5 + $0x28] sm:$0xff]
    %v264 = vld [vmem:[%s5 + $0x30] sm:$0xff]
    %v265 = vld [vmem:[%s5 + $0x38] sm:$0xff]
    %v266 = vld [vmem:[%s6] sm:$0x1]
    %v268 = vlaneseq
    %v269 = vshrl.u32 %v268, 7
    %v270 = vsub.s32 0, %v269
    %v271 = vrot.slane %v266, %v270
    %v274 = vsel %vm73, %v256, 0
    %v277 = vsel %vm73, %v257, 0
    %279 = vmatprep.subr.mxu0 0.0
    %280 = vmatpush1.msra.mxu0 %v258
    %281 = vmatprep.subr.mxu0 0.0
    %282 = vmatpush1.msra.mxu0 %v259
    %283 = vmatprep.subr.mxu0 0.0
    %284 = vmatpush1.msra.mxu0 %v260
    %285 = vmatprep.subr.mxu0 0.0
    %286 = vmatpush1.msra.mxu0 %v261
    %287 = vmatprep.subr.mxu0 0.0
    %288 = vmatpush1.msra.mxu0 %v262
    %289 = vmatprep.subr.mxu0 0.0
    %290 = vmatpush1.msra.mxu0 %v263
    %291 = vmatprep.subr.mxu0 0.0
    %292 = vmatpush1.msra.mxu0 %v264
    %293 = vmatprep.subr.mxu0 0.0
    %294 = vmatpush1.msra.mxu0 %v265
    %295 = vmatprep.subr.mxu0 0.0
    %296 = vmatpush1.msra.mxu0 0.0
    %297 = vmatprep.subr.mxu0 0.0
    %298 = vmatpush1.msra.mxu0 0.0
    %299 = vmatprep.subr.mxu0 0.0
    %300 = vmatpush1.msra.mxu0 0.0
    %301 = vmatprep.subr.mxu0 0.0
    %302 = vmatpush1.msra.mxu0 0.0
    %303 = vmatprep.subr.mxu0 0.0
    %304 = vmatpush1.msra.mxu0 0.0
    %305 = vmatprep.subr.mxu0 0.0
    %306 = vmatpush1.msra.mxu0 0.0
    %307 = vmatprep.subr.mxu0 0.0
    %308 = vmatpush1.msra.mxu0 0.0
    %309 = vmatprep.subr.mxu0 0.0
    %310 = vmatpush1.msra.mxu0 0.0
    %311 = vmatprep.subr.mxu0 0.0
    %312 = vmatpush1.msra.mxu0 0.0
    %313 = vmatprep.subr.mxu0 0.0
    %314 = vmatpush1.msra.mxu0 0.0
    %315 = vmatprep.subr.mxu0 0.0
    %316 = vmatpush1.msra.mxu0 0.0
    %317 = vmatprep.subr.mxu0 0.0
    %318 = vmatpush1.msra.mxu0 0.0
    %319 = vmatprep.subr.mxu0 0.0
    %320 = vmatpush1.msra.mxu0 0.0
    %321 = vmatprep.subr.mxu0 0.0
    %322 = vmatpush1.msra.mxu0 0.0
    %323 = vmatprep.subr.mxu0 0.0
    %324 = vmatpush1.msra.mxu0 0.0
    %325 = vmatprep.subr.mxu0 0.0
    %326 = vmatpush1.msra.mxu0 0.0
    %327 = vmatprep.subr.mxu0 0.0
    %328 = vmatpush1.msra.mxu0 0.0
    %329 = vmatprep.subr.mxu0 0.0
    %330 = vmatpush1.msra.mxu0 0.0
    %331 = vmatprep.subr.mxu0 0.0
    %332 = vmatpush1.msra.mxu0 0.0
    %333 = vmatprep.subr.mxu0 0.0
    %334 = vmatpush1.msra.mxu0 0.0
    %335 = vmatprep.subr.mxu0 0.0
    %336 = vmatpush1.msra.mxu0 0.0
    %337 = vmatprep.subr.mxu0 0.0
    %338 = vmatpush1.msra.mxu0 0.0
    %339 = vmatprep.subr.mxu0 0.0
    %340 = vmatpush1.msra.mxu0 0.0
    %341 = vmatprep.subr.mxu0 0.0
    %342 = vmatpush1.msra.mxu0 0.0
    %343 = vmatprep.mubr.f32.mxu0 0.0
    %344 = vmatmul.mubr.f32.gmra.mrb[0].mxu0 %v274
    %v345 = vpop.f32.mrb[0].mxu0
    %v346 = vadd.f32 %v271, %v345
    %v347 = vpop.f32.mrb[0].mxu0
    %348 = vmatprep.mubr.f32.mxu0 0.0
    %349 = vmatmul.mubr.f32.gmra.mrb[0].mxu0 %v277
    %v350 = vpop.f32.mrb[0].mxu0
    %v351 = vadd.f32 %v271, %v350
    %v352 = vpop.f32.mrb[0].mxu0
    %353 = vdwg.mxu0
    %v354 = vadd.f32 %v346, 0.0
    %v355 = vadd.f32 %v351, 0.0
    %v356 = vadd.f32 %v354, %v147
    %v357 = vadd.f32 %v355, %v152
    %s358 = scalar_lea.vmem %s1, 64
    %v359 = vld [vmem:[%s358] sm:$0xff]
    %v360 = vld [vmem:[%s358 + $0x8] sm:$0xff]
    %v361 = vld [vmem:[%s358 + $0x10] sm:$0xff]
    %v362 = vld [vmem:[%s358 + $0x18] sm:$0xff]
    %v363 = vld [vmem:[%s358 + $0x20] sm:$0xff]
    %v364 = vld [vmem:[%s358 + $0x28] sm:$0xff]
    %v365 = vld [vmem:[%s358 + $0x30] sm:$0xff]
    %v366 = vld [vmem:[%s358 + $0x38] sm:$0xff]
    %s367 = scalar_lea.vmem %s2, 1
    %v368 = vld [vmem:[%s367] sm:$0x1]
    %v370 = vlaneseq
    %v371 = vshrl.u32 %v370, 7
    %v372 = vsub.s32 0, %v371
    %v373 = vrot.slane %v368, %v372
    %375 = vrot.lane.b32.xlu0 %v56, 64
    %v376 = vpop.permute.xlu0 %375
    %377 = vrot.lane.b32.xlu0 %v57, 64
    %v378 = vpop.permute.xlu0 %377
    %v379 = vsel %vm73, %v376, 0
    %v381 = vsel %vm73, %v378, 0
    %383 = vmatprep.subr.mxu0 0.0
    %384 = vmatpush1.msra.mxu0 %v359
    %385 = vmatprep.subr.mxu0 0.0
    %386 = vmatpush1.msra.mxu0 %v360
    %387 = vmatprep.subr.mxu0 0.0
    %388 = vmatpush1.msra.mxu0 %v361
    %389 = vmatprep.subr.mxu0 0.0
    %390 = vmatpush1.msra.mxu0 %v362
    %391 = vmatprep.subr.mxu0 0.0
    %392 = vmatpush1.msra.mxu0 %v363
    %393 = vmatprep.subr.mxu0 0.0
    %394 = vmatpush1.msra.mxu0 %v364
    %395 = vmatprep.subr.mxu0 0.0
    %396 = vmatpush1.msra.mxu0 %v365
    %397 = vmatprep.subr.mxu0 0.0
    %398 = vmatpush1.msra.mxu0 %v366
    %399 = vmatprep.subr.mxu0 0.0
    %400 = vmatpush1.msra.mxu0 0.0
    %401 = vmatprep.subr.mxu0 0.0
    %402 = vmatpush1.msra.mxu0 0.0
    %403 = vmatprep.subr.mxu0 0.0
    %404 = vmatpush1.msra.mxu0 0.0
    %405 = vmatprep.subr.mxu0 0.0
    %406 = vmatpush1.msra.mxu0 0.0
    %407 = vmatprep.subr.mxu0 0.0
    %408 = vmatpush1.msra.mxu0 0.0
    %409 = vmatprep.subr.mxu0 0.0
    %410 = vmatpush1.msra.mxu0 0.0
    %411 = vmatprep.subr.mxu0 0.0
    %412 = vmatpush1.msra.mxu0 0.0
    %413 = vmatprep.subr.mxu0 0.0
    %414 = vmatpush1.msra.mxu0 0.0
    %415 = vmatprep.subr.mxu0 0.0
    %416 = vmatpush1.msra.mxu0 0.0
    %417 = vmatprep.subr.mxu0 0.0
    %418 = vmatpush1.msra.mxu0 0.0
    %419 = vmatprep.subr.mxu0 0.0
    %420 = vmatpush1.msra.mxu0 0.0
    %421 = vmatprep.subr.mxu0 0.0
    %422 = vmatpush1.msra.mxu0 0.0
    %423 = vmatprep.subr.mxu0 0.0
    %424 = vmatpush1.msra.mxu0 0.0
    %425 = vmatprep.subr.mxu0 0.0
    %426 = vmatpush1.msra.mxu0 0.0
    %427 = vmatprep.subr.mxu0 0.0
    %428 = vmatpush1.msra.mxu0 0.0
    %429 = vmatprep.subr.mxu0 0.0
    %430 = vmatpush1.msra.mxu0 0.0
    %431 = vmatprep.subr.mxu0 0.0
    %432 = vmatpush1.msra.mxu0 0.0
    %433 = vmatprep.subr.mxu0 0.0
    %434 = vmatpush1.msra.mxu0 0.0
    %435 = vmatprep.subr.mxu0 0.0
    %436 = vmatpush1.msra.mxu0 0.0
    %437 = vmatprep.subr.mxu0 0.0
    %438 = vmatpush1.msra.mxu0 0.0
    %439 = vmatprep.subr.mxu0 0.0
    %440 = vmatpush1.msra.mxu0 0.0
    %441 = vmatprep.subr.mxu0 0.0
    %442 = vmatpush1.msra.mxu0 0.0
    %443 = vmatprep.subr.mxu0 0.0
    %444 = vmatpush1.msra.mxu0 0.0
    %445 = vmatprep.subr.mxu0 0.0
    %446 = vmatpush1.msra.mxu0 0.0
    %447 = vmatprep.mubr.f32.mxu0 0.0
    %448 = vmatmul.mubr.f32.gmra.mrb[0].mxu0 %v379
    %v449 = vpop.f32.mrb[0].mxu0
    %v450 = vadd.f32 %v373, %v449
    %v451 = vpop.f32.mrb[0].mxu0
    %452 = vmatprep.mubr.f32.mxu0 0.0
    %453 = vmatmul.mubr.f32.gmra.mrb[0].mxu0 %v381
    %v454 = vpop.f32.mrb[0].mxu0
    %v455 = vadd.f32 %v373, %v454
    %v456 = vpop.f32.mrb[0].mxu0
    %457 = vdwg.mxu0
    %s458 = scalar_lea.vmem %s3, 32
    %v459 = vld [vmem:[%s458] sm:$0xff]
    %v460 = vld [vmem:[%s458 + $0x8] sm:$0xff]
    %v461 = vld [vmem:[%s458 + $0x10] sm:$0xff]
    %v462 = vld [vmem:[%s458 + $0x18] sm:$0xff]
    %s463 = scalar_lea.vmem %s4, 1
    %v464 = vld [vmem:[%s463] sm:$0x1]
    %v466 = vlaneseq
    %v467 = vshrl.u32 %v466, 7
    %v468 = vsub.s32 0, %v467
    %v469 = vrot.slane %v464, %v468
    %v472 = vsel %vm166, %v450, 0
    %v475 = vsel %vm166, %v455, 0
    %477 = vmatprep.subr.mxu0 0.0
    %478 = vmatpush1.msra.mxu0 %v459
    %479 = vmatprep.subr.mxu0 0.0
    %480 = vmatpush1.msra.mxu0 %v460
    %481 = vmatprep.subr.mxu0 0.0
    %482 = vmatpush1.msra.mxu0 %v461
    %483 = vmatprep.subr.mxu0 0.0
    %484 = vmatpush1.msra.mxu0 %v462
    %485 = vmatprep.subr.mxu0 0.0
    %486 = vmatpush1.msra.mxu0 0.0
    %487 = vmatprep.subr.mxu0 0.0
    %488 = vmatpush1.msra.mxu0 0.0
    %489 = vmatprep.subr.mxu0 0.0
    %490 = vmatpush1.msra.mxu0 0.0
    %491 = vmatprep.subr.mxu0 0.0
    %492 = vmatpush1.msra.mxu0 0.0
    %493 = vmatprep.subr.mxu0 0.0
    %494 = vmatpush1.msra.mxu0 0.0
    %495 = vmatprep.subr.mxu0 0.0
    %496 = vmatpush1.msra.mxu0 0.0
    %497 = vmatprep.subr.mxu0 0.0
    %498 = vmatpush1.msra.mxu0 0.0
    %499 = vmatprep.subr.mxu0 0.0
    %500 = vmatpush1.msra.mxu0 0.0
    %501 = vmatprep.subr.mxu0 0.0
    %502 = vmatpush1.msra.mxu0 0.0
    %503 = vmatprep.subr.mxu0 0.0
    %504 = vmatpush1.msra.mxu0 0.0
    %505 = vmatprep.subr.mxu0 0.0
    %506 = vmatpush1.msra.mxu0 0.0
    %507 = vmatprep.subr.mxu0 0.0
    %508 = vmatpush1.msra.mxu0 0.0
    %509 = vmatprep.subr.mxu0 0.0
    %510 = vmatpush1.msra.mxu0 0.0
    %511 = vmatprep.subr.mxu0 0.0
    %512 = vmatpush1.msra.mxu0 0.0
    %513 = vmatprep.subr.mxu0 0.0
    %514 = vmatpush1.msra.mxu0 0.0
    %515 = vmatprep.subr.mxu0 0.0
    %516 = vmatpush1.msra.mxu0 0.0
    %517 = vmatprep.subr.mxu0 0.0
    %518 = vmatpush1.msra.mxu0 0.0
    %519 = vmatprep.subr.mxu0 0.0
    %520 = vmatpush1.msra.mxu0 0.0
    %521 = vmatprep.subr.mxu0 0.0
    %522 = vmatpush1.msra.mxu0 0.0
    %523 = vmatprep.subr.mxu0 0.0
    %524 = vmatpush1.msra.mxu0 0.0
    %525 = vmatprep.subr.mxu0 0.0
    %526 = vmatpush1.msra.mxu0 0.0
    %527 = vmatprep.subr.mxu0 0.0
    %528 = vmatpush1.msra.mxu0 0.0
    %529 = vmatprep.subr.mxu0 0.0
    %530 = vmatpush1.msra.mxu0 0.0
    %531 = vmatprep.subr.mxu0 0.0
    %532 = vmatpush1.msra.mxu0 0.0
    %533 = vmatprep.subr.mxu0 0.0
    %534 = vmatpush1.msra.mxu0 0.0
    %535 = vmatprep.subr.mxu0 0.0
    %536 = vmatpush1.msra.mxu0 0.0
    %537 = vmatprep.subr.mxu0 0.0
    %538 = vmatpush1.msra.mxu0 0.0
    %539 = vmatprep.subr.mxu0 0.0
    %540 = vmatpush1.msra.mxu0 0.0
    %541 = vmatprep.mubr.f32.mxu0 0.0
    %542 = vmatmul.mubr.f32.gmra.mrb[0].mxu0 %v472
    %v543 = vpop.f32.mrb[0].mxu0
    %v544 = vadd.f32 %v469, %v543
    %v545 = vpop.f32.mrb[0].mxu0
    %546 = vmatprep.mubr.f32.mxu0 0.0
    %547 = vmatmul.mubr.f32.gmra.mrb[0].mxu0 %v475
    %v548 = vpop.f32.mrb[0].mxu0
    %v549 = vadd.f32 %v469, %v548
    %v550 = vpop.f32.mrb[0].mxu0
    %551 = vdwg.mxu0
    %v552 = vmul.f32 %v544, 0.5
    %v553 = vmul.f32 %v549, 0.5
    %v554 = vmul.f32 %v544, 0.70710677
    %v555 = vmul.f32 %v549, 0.70710677
    %v556 = verf.f32.pop %v554
    %v557 = verf.f32.pop %v555
    %v558 = vadd.f32 %v556, 1.0
    %v559 = vadd.f32 %v557, 1.0
    %v560 = vmul.f32 %v552, %v558
    %v561 = vmul.f32 %v553, %v559
    %s562 = scalar_lea.vmem %s5, 64
    %v563 = vld [vmem:[%s562] sm:$0xff]
    %v564 = vld [vmem:[%s562 + $0x8] sm:$0xff]
    %v565 = vld [vmem:[%s562 + $0x10] sm:$0xff]
    %v566 = vld [vmem:[%s562 + $0x18] sm:$0xff]
    %v567 = vld [vmem:[%s562 + $0x20] sm:$0xff]
    %v568 = vld [vmem:[%s562 + $0x28] sm:$0xff]
    %v569 = vld [vmem:[%s562 + $0x30] sm:$0xff]
    %v570 = vld [vmem:[%s562 + $0x38] sm:$0xff]
    %s571 = scalar_lea.vmem %s6, 1
    %v572 = vld [vmem:[%s571] sm:$0x1]
    %v574 = vlaneseq
    %v575 = vshrl.u32 %v574, 7
    %v576 = vsub.s32 0, %v575
    %v577 = vrot.slane %v572, %v576
    %v580 = vsel %vm73, %v560, 0
    %v583 = vsel %vm73, %v561, 0
    %585 = vmatprep.subr.mxu0 0.0
    %586 = vmatpush1.msra.mxu0 %v563
    %587 = vmatprep.subr.mxu0 0.0
    %588 = vmatpush1.msra.mxu0 %v564
    %589 = vmatprep.subr.mxu0 0.0
    %590 = vmatpush1.msra.mxu0 %v565
    %591 = vmatprep.subr.mxu0 0.0
    %592 = vmatpush1.msra.mxu0 %v566
    %593 = vmatprep.subr.mxu0 0.0
    %594 = vmatpush1.msra.mxu0 %v567
    %595 = vmatprep.subr.mxu0 0.0
    %596 = vmatpush1.msra.mxu0 %v568
    %597 = vmatprep.subr.mxu0 0.0
    %598 = vmatpush1.msra.mxu0 %v569
    %599 = vmatprep.subr.mxu0 0.0
    %600 = vmatpush1.msra.mxu0 %v570
    %601 = vmatprep.subr.mxu0 0.0
    %602 = vmatpush1.msra.mxu0 0.0
    %603 = vmatprep.subr.mxu0 0.0
    %604 = vmatpush1.msra.mxu0 0.0
    %605 = vmatprep.subr.mxu0 0.0
    %606 = vmatpush1.msra.mxu0 0.0
    %607 = vmatprep.subr.mxu0 0.0
    %608 = vmatpush1.msra.mxu0 0.0
    %609 = vmatprep.subr.mxu0 0.0
    %610 = vmatpush1.msra.mxu0 0.0
    %611 = vmatprep.subr.mxu0 0.0
    %612 = vmatpush1.msra.mxu0 0.0
    %613 = vmatprep.subr.mxu0 0.0
    %614 = vmatpush1.msra.mxu0 0.0
    %615 = vmatprep.subr.mxu0 0.0
    %616 = vmatpush1.msra.mxu0 0.0
    %617 = vmatprep.subr.mxu0 0.0
    %618 = vmatpush1.msra.mxu0 0.0
    %619 = vmatprep.subr.mxu0 0.0
    %620 = vmatpush1.msra.mxu0 0.0
    %621 = vmatprep.subr.mxu0 0.0
    %622 = vmatpush1.msra.mxu0 0.0
    %623 = vmatprep.subr.mxu0 0.0
    %624 = vmatpush1.msra.mxu0 0.0
    %625 = vmatprep.subr.mxu0 0.0
    %626 = vmatpush1.msra.mxu0 0.0
    %627 = vmatprep.subr.mxu0 0.0
    %628 = vmatpush1.msra.mxu0 0.0
    %629 = vmatprep.subr.mxu0 0.0
    %630 = vmatpush1.msra.mxu0 0.0
    %631 = vmatprep.subr.mxu0 0.0
    %632 = vmatpush1.msra.mxu0 0.0
    %633 = vmatprep.subr.mxu0 0.0
    %634 = vmatpush1.msra.mxu0 0.0
    %635 = vmatprep.subr.mxu0 0.0
    %636 = vmatpush1.msra.mxu0 0.0
    %637 = vmatprep.subr.mxu0 0.0
    %638 = vmatpush1.msra.mxu0 0.0
    %639 = vmatprep.subr.mxu0 0.0
    %640 = vmatpush1.msra.mxu0 0.0
    %641 = vmatprep.subr.mxu0 0.0
    %642 = vmatpush1.msra.mxu0 0.0
    %643 = vmatprep.subr.mxu0 0.0
    %644 = vmatpush1.msra.mxu0 0.0
    %645 = vmatprep.subr.mxu0 0.0
    %646 = vmatpush1.msra.mxu0 0.0
    %647 = vmatprep.subr.mxu0 0.0
    %648 = vmatpush1.msra.mxu0 0.0
    %649 = vmatprep.mubr.f32.mxu0 0.0
    %650 = vmatmul.mubr.f32.gmra.mrb[0].mxu0 %v580
    %v651 = vpop.f32.mrb[0].mxu0
    %v652 = vadd.f32 %v577, %v651
    %v653 = vpop.f32.mrb[0].mxu0
    %654 = vmatprep.mubr.f32.mxu0 0.0
    %655 = vmatmul.mubr.f32.gmra.mrb[0].mxu0 %v583
    %v656 = vpop.f32.mrb[0].mxu0
    %v657 = vadd.f32 %v577, %v656
    %v658 = vpop.f32.mrb[0].mxu0
    %659 = vdwg.mxu0
    %v660 = vadd.f32 %v356, %v652
    %v661 = vadd.f32 %v357, %v657
    %v662 = vadd.f32 %v660, %v450
    %v663 = vadd.f32 %v661, %v455
    %v664 = vld [vmem:[%s7] sm:$0x1]
    %v665 = vld [vmem:[%s8] sm:$0x1]
    %v666 = vsel %vm166, %v662, 0.0
    %667 = vadd.xlane.f32.xlu0 %v666
    %v668 = vpop.xlane.xlu0 %667
    %v669 = vsel %vm166, %v663, 0.0
    %670 = vadd.xlane.f32.xlu0 %v669
    %v671 = vpop.xlane.xlu0 %670
    %v672 = vrcp.pop 32.0
    %v673 = vmul.f32 %v668, %v672
    %v674 = vmul.f32 %v671, %v672
    %v675 = vsub.f32 %v662, %v673
    %v676 = vsub.f32 %v663, %v674
    %v677 = vmul.f32 %v675, %v675
    %v678 = vmul.f32 %v676, %v676
    %v679 = vsel %vm166, %v677, 0.0
    %680 = vadd.xlane.f32.xlu0 %v679
    %v681 = vpop.xlane.xlu0 %680
    %v682 = vsel %vm166, %v678, 0.0
    %683 = vadd.xlane.f32.xlu0 %v682
    %v684 = vpop.xlane.xlu0 %683
    %v685 = vmul.f32 %v681, %v672
    %v686 = vmul.f32 %v684, %v672
    %v687 = vadd.f32 %v685, 1e-05
    %v688 = vadd.f32 %v686, 1e-05
    %v689 = vrsqrt.pop %v687
    %v690 = vrsqrt.pop %v688
    %v691 = vmul.f32 %v675, %v689
    %v692 = vmul.f32 %v676, %v690
    %v694 = vlaneseq
    %v695 = vshrl.u32 %v694, 7
    %v696 = vsub.s32 0, %v695
    %v697 = vrot.slane %v664, %v696
    %v699 = vmul.f32 %v691, %v697
    %v700 = vmul.f32 %v692, %v697
    %v702 = vlaneseq
    %v703 = vshrl.u32 %v702, 7
    %v704 = vsub.s32 0, %v703
    %v705 = vrot.slane %v665, %v704
    %v707 = vadd.f32 %v699, %v705
    %v708 = vadd.f32 %v700, %v705
    %709 = vst.msk [vmem:[#allocation2] sm:$0xff] %vm166, %v707
    %710 = vst.msk [vmem:[#allocation2 + $0x8] sm:$0xff] %vm166, %v708
    // Predicated region
    $region38: #{tpu_custom_call.1} parent=1 // pred_check
      _
    $region39: #{tpu_custom_call.1} parent=1 // pred_check_branch
      %712 = sbr.rel (0) target = $region41
    $region40: #{tpu_custom_call.1} parent=1 // pred_region
      %s714 = ssub.s32 256, 256
      %715 = vsyncadd [#allocation3], %s714
      %s716 = sshll.u32 [#allocation2], 4
      %s717 = int_to_ptr.vmem [resolvable:$true] %s716
      %722 = dma.vmem_to_hbm [thread:$0]  %s717, 256, %s9, [#allocation3], 128, 128, 8
    $region41: #{tpu_custom_call.1} parent=1 // pred_fallthru
      _
    // Predicated region
    $region42: #{tpu_custom_call.1} parent=1 // pred_check
      _
    $region43: #{tpu_custom_call.1} parent=1 // pred_check_branch
      %724 = sbr.rel (0) target = $region45
    $region44: #{tpu_custom_call.1} parent=1 // pred_region
      %725 = dma.done [#allocation3], 256
    $region45: #{tpu_custom_call.1} parent=1 // pred_fallthru
      _
    %726 = vsyncpa [#allocation3], 1

</llo_original>
